<compile_context>
chip_gen: v7x
topology: tpu7x:2x2x1
jax: 0.10.0
libtpu: 0.0.40
codegen_flags: <defaults>
</compile_context>

<pallas_src>
import jax
import jax.numpy as jnp
from jax.experimental import pallas as pl
from jax.experimental.pallas import tpu as pltpu

ACTIONS = ['UP', 'RIGHT', 'DOWN', 'LEFT', 'WAIT', 'BOMB']
INPUT_DIM = 21
HIDDEN1 = 128
HIDDEN2 = 64
OUTPUT_DIM = len(ACTIONS)   # 6
OUTPUT_PAD = 8              # narrow stored width; block last dim == full array dim -> legal


def _round_up(n, m):
    return ((n + m - 1) // m) * m


def qnet_kernel(x_ref, w1_ref, b1_ref, w2_ref, b2_ref, w3_ref, b3_ref, o_ref):
    # x: (TILE_B, 21) bf16; weights bf16 stored (in, out); biases f32; f32 accumulation.
    h1 = jnp.dot(x_ref[...], w1_ref[...], preferred_element_type=jnp.float32) + b1_ref[...]
    h1 = jnp.maximum(h1, 0.0).astype(jnp.bfloat16)           # bias/ReLU in f32, recast for MXU
    h2 = jnp.dot(h1, w2_ref[...], preferred_element_type=jnp.float32) + b2_ref[...]
    h2 = jnp.maximum(h2, 0.0).astype(jnp.bfloat16)
    # fc3 padded 6 -> 8 columns; narrow f32 store (HBM write bytes are the binding resource).
    o_ref[...] = jnp.dot(h2, w3_ref[...], preferred_element_type=jnp.float32) + b3_ref[...]


def qnetwork_forward(x, w1, b1, w2, b2, w3, b3, *, tile_b=4096):
    """x: (B, 21) float32. Weights stored transposed as (in, out); PyTorch semantics x @ W.T + b."""
    B = x.shape[0]
    # Tile must be a multiple of 16 (bf16 sublane packing).  Cap at ceil(B/2) (rounded up
    # to 16) so the grid has >= 2 steps whenever possible -> both v7x TCs get work.
    half_cap = _round_up(pl.cdiv(B, 2), 16)
    tile_b = max(16, min(_round_up(tile_b, 16), half_cap))
    B_pad = pl.cdiv(B, tile_b) * tile_b

    x = x.astype(jnp.bfloat16)
    if B_pad != B:
        x = jnp.pad(x, ((0, B_pad - B), (0, 0)))

    # bf16 matmul operands (f32 accumulation in-kernel); fc3 zero-padded to 8 output columns.
    w1b = w1.astype(jnp.bfloat16)
    w2b = w2.astype(jnp.bfloat16)
    w3b = jnp.zeros((HIDDEN2, OUTPUT_PAD), jnp.bfloat16).at[:, :OUTPUT_DIM].set(
        w3.astype(jnp.bfloat16))
    b3p = jnp.zeros((1, OUTPUT_PAD), jnp.float32).at[:, :OUTPUT_DIM].set(b3)

    grid = (B_pad // tile_b,)
    const = lambda shape: pl.BlockSpec(shape, lambda i: (0, 0))  # resident in VMEM across steps

    flops = 2 * B_pad * (INPUT_DIM * HIDDEN1 + HIDDEN1 * HIDDEN2 + HIDDEN2 * OUTPUT_PAD)
    weight_bytes = (INPUT_DIM * HIDDEN1 + HIDDEN1 * HIDDEN2 + HIDDEN2 * OUTPUT_PAD) * 2 \
                   + (HIDDEN1 + HIDDEN2 + OUTPUT_PAD) * 4
    bytes_accessed = B_pad * (INPUT_DIM * 2 + OUTPUT_PAD * 4) + weight_bytes

    out = pl.pallas_call(
        qnet_kernel,
        out_shape=jax.ShapeDtypeStruct((B_pad, OUTPUT_PAD), jnp.float32),
        grid=grid,
        in_specs=[
            pl.BlockSpec((tile_b, INPUT_DIM), lambda i: (i, 0)),   # x tiles stream over batch
            const((INPUT_DIM, HIDDEN1)),
            const((1, HIDDEN1)),
            const((HIDDEN1, HIDDEN2)),
            const((1, HIDDEN2)),
            const((HIDDEN2, OUTPUT_PAD)),
            const((1, OUTPUT_PAD)),
        ],
        out_specs=pl.BlockSpec((tile_b, OUTPUT_PAD), lambda i: (i, 0)),
        compiler_params=pltpu.CompilerParams(dimension_semantics=("parallel",)),
        cost_estimate=pl.CostEstimate(flops=flops, transcendentals=0,
                                      bytes_accessed=bytes_accessed),
    )(x, w1b, b1, w2b, b2, w3b, b3p)

    # Narrow output -> this slice now touches only 32 B/row instead of 512 B/row.
    return out[:B, :OUTPUT_DIM]


def init_params(key):
    """Deterministic init matching nn.Linear shapes (stored transposed as (in, out))."""
    ks = jax.random.split(key, 6)

    def linear(kw, kb, fan_in, fan_out):
        bound = 1.0 / jnp.sqrt(fan_in)
        # PyTorch stores W as (out, in); we keep the transpose (in, out) for the kernel.
        w = jax.random.uniform(kw, (fan_in, fan_out), jnp.float32, -bound, bound)
        b = jax.random.uniform(kb, (1, fan_out), jnp.float32, -bound, bound)
        return w, b

    w1, b1 = linear(ks[0], ks[1], INPUT_DIM, HIDDEN1)
    w2, b2 = linear(ks[2], ks[3], HIDDEN1, HIDDEN2)
    w3, b3 = linear(ks[4], ks[5], HIDDEN2, OUTPUT_DIM)
    return w1, b1, w2, b2, w3, b3


def reference_forward(x, w1, b1, w2, b2, w3, b3):
    """Reference with the same numerics as the kernel: bf16 operands, f32 accumulation."""
    to_bf = lambda a: a.astype(jnp.bfloat16).astype(jnp.float32)
    h1 = jnp.maximum(to_bf(x) @ to_bf(w1) + b1, 0.0)
    h2 = jnp.maximum(to_bf(h1) @ to_bf(w2) + b2, 0.0)
    return to_bf(h2) @ to_bf(w3) + b3


if __name__ == "__main__":
    key = jax.random.PRNGKey(0)
    k_x, k_p = jax.random.split(key)

    B = 20  # small smoke-test batch (non-multiple of the tile to exercise padding + grid)
    x = jax.random.normal(k_x, (B, INPUT_DIM), dtype=jnp.float32)
    params = init_params(k_p)

    # default tile_b is clamped to ceil(B/2) -> tile_b=16, grid=(2,): exercises padding,
    # a multi-step grid, and the >=2-steps (v7x two-TC) sizing path.
    out = qnetwork_forward(x, *params)
    out = jax.block_until_ready(out)

    ref = reference_forward(x, *params)
    assert out.shape == (B, OUTPUT_DIM)
    assert jnp.allclose(out, ref, atol=1e-2, rtol=1e-2), "mismatch vs reference"

    print("KERNEL_OK")
</pallas_src>

<mosaic_0001>
module attributes {stable_mosaic.version = 11 : i64} {
  func.func @qnet_kernel(%arg0: i32, %arg1: memref<16x21xbf16, #tpu.memory_space<vmem>>, %arg2: memref<21x128xbf16, #tpu.memory_space<vmem>>, %arg3: memref<1x128xf32, #tpu.memory_space<vmem>>, %arg4: memref<128x64xbf16, #tpu.memory_space<vmem>>, %arg5: memref<1x64xf32, #tpu.memory_space<vmem>>, %arg6: memref<64x8xbf16, #tpu.memory_space<vmem>>, %arg7: memref<1x8xf32, #tpu.memory_space<vmem>>, %arg8: memref<16x8xf32, #tpu.memory_space<vmem>>) attributes {dimension_semantics = [#tpu.dimension_semantics<parallel>], iteration_bounds = array<i64: 2>, scalar_prefetch = 0 : i64, scratch_operands = 0 : i64, tpu.core_type = #tpu.core_type<tc>, window_params = [{transform_indices = @transform_0, window_bounds = array<i64: 16, 21>}, {pipeline_mode = #tpu.pipeline_mode<synchronous>, transform_indices = @transform_1, window_bounds = array<i64: 21, 128>}, {pipeline_mode = #tpu.pipeline_mode<synchronous>, transform_indices = @transform_2, window_bounds = array<i64: 1, 128>}, {pipeline_mode = #tpu.pipeline_mode<synchronous>, transform_indices = @transform_3, window_bounds = array<i64: 128, 64>}, {pipeline_mode = #tpu.pipeline_mode<synchronous>, transform_indices = @transform_4, window_bounds = array<i64: 1, 64>}, {pipeline_mode = #tpu.pipeline_mode<synchronous>, transform_indices = @transform_5, window_bounds = array<i64: 64, 8>}, {pipeline_mode = #tpu.pipeline_mode<synchronous>, transform_indices = @transform_6, window_bounds = array<i64: 1, 8>}, {transform_indices = @transform_7, window_bounds = array<i64: 16, 8>}]} {
    %c0 = arith.constant 0 : index
    %c0_0 = arith.constant 0 : index
    %0 = vector.load %arg1[%c0, %c0_0] : memref<16x21xbf16, #tpu.memory_space<vmem>>, vector<16x21xbf16>
    %c0_1 = arith.constant 0 : index
    %c0_2 = arith.constant 0 : index
    %1 = vector.load %arg2[%c0_1, %c0_2] : memref<21x128xbf16, #tpu.memory_space<vmem>>, vector<21x128xbf16>
    %cst = arith.constant dense<0.000000e+00> : vector<16x128xf32>
    %2 = tpu.matmul %0, %1, %cst {dimension_numbers = #tpu.dot_dimension_numbers<[1], [0], [0], [1], [0, 0, 1, 1], [], []>} : vector<16x21xbf16>, vector<21x128xbf16>, vector<16x128xf32> -> vector<16x128xf32>
    %c0_3 = arith.constant 0 : index
    %c0_4 = arith.constant 0 : index
    %3 = vector.load %arg3[%c0_3, %c0_4] : memref<1x128xf32, #tpu.memory_space<vmem>>, vector<1x128xf32>
    %4 = vector.broadcast %3 : vector<1x128xf32> to vector<16x128xf32>
    %5 = arith.addf %2, %4 : vector<16x128xf32>
    %cst_5 = arith.constant 0.000000e+00 : f32
    %6 = vector.broadcast %cst_5 : f32 to vector<16x128xf32>
    %7 = arith.maximumf %5, %6 : vector<16x128xf32>
    %8 = arith.truncf %7 : vector<16x128xf32> to vector<16x128xbf16>
    %c0_6 = arith.constant 0 : index
    %c0_7 = arith.constant 0 : index
    %9 = vector.load %arg4[%c0_6, %c0_7] : memref<128x64xbf16, #tpu.memory_space<vmem>>, vector<128x64xbf16>
    %cst_8 = arith.constant dense<0.000000e+00> : vector<16x64xf32>
    %10 = tpu.matmul %8, %9, %cst_8 {dimension_numbers = #tpu.dot_dimension_numbers<[1], [0], [0], [1], [0, 0, 1, 1], [], []>} : vector<16x128xbf16>, vector<128x64xbf16>, vector<16x64xf32> -> vector<16x64xf32>
    %c0_9 = arith.constant 0 : index
    %c0_10 = arith.constant 0 : index
    %11 = vector.load %arg5[%c0_9, %c0_10] : memref<1x64xf32, #tpu.memory_space<vmem>>, vector<1x64xf32>
    %12 = vector.broadcast %11 : vector<1x64xf32> to vector<16x64xf32>
    %13 = arith.addf %10, %12 : vector<16x64xf32>
    %cst_11 = arith.constant 0.000000e+00 : f32
    %14 = vector.broadcast %cst_11 : f32 to vector<16x64xf32>
    %15 = arith.maximumf %13, %14 : vector<16x64xf32>
    %16 = arith.truncf %15 : vector<16x64xf32> to vector<16x64xbf16>
    %c0_12 = arith.constant 0 : index
    %c0_13 = arith.constant 0 : index
    %17 = vector.load %arg6[%c0_12, %c0_13] : memref<64x8xbf16, #tpu.memory_space<vmem>>, vector<64x8xbf16>
    %cst_14 = arith.constant dense<0.000000e+00> : vector<16x8xf32>
    %18 = tpu.matmul %16, %17, %cst_14 {dimension_numbers = #tpu.dot_dimension_numbers<[1], [0], [0], [1], [0, 0, 1, 1], [], []>} : vector<16x64xbf16>, vector<64x8xbf16>, vector<16x8xf32> -> vector<16x8xf32>
    %c0_15 = arith.constant 0 : index
    %c0_16 = arith.constant 0 : index
    %19 = vector.load %arg7[%c0_15, %c0_16] : memref<1x8xf32, #tpu.memory_space<vmem>>, vector<1x8xf32>
    %20 = vector.broadcast %19 : vector<1x8xf32> to vector<16x8xf32>
    %21 = arith.addf %18, %20 : vector<16x8xf32>
    %c0_17 = arith.constant 0 : index
    %c0_18 = arith.constant 0 : index
    %22 = vector.load %arg8[%c0_17, %c0_18] : memref<16x8xf32, #tpu.memory_space<vmem>>, vector<16x8xf32>
    tpu.vector_store %arg8[%c0_17, %c0_18], %21 {strides = array<i32>} : memref<16x8xf32, #tpu.memory_space<vmem>>, vector<16x8xf32>,
    return
  }
  func.func @transform_0(%arg0: i32) -> (i32, i32) {
    %c0_i32 = arith.constant 0 : i32
    %c0_i32_0 = arith.constant 0 : i32
    return %arg0, %c0_i32 : i32, i32
  }
  func.func @transform_1(%arg0: i32) -> (i32, i32) {
    %c0_i32 = arith.constant 0 : i32
    %c0_i32_0 = arith.constant 0 : i32
    %c0_i32_1 = arith.constant 0 : i32
    return %c0_i32, %c0_i32_0 : i32, i32
  }
  func.func @transform_2(%arg0: i32) -> (i32, i32) {
    %c0_i32 = arith.constant 0 : i32
    %c0_i32_0 = arith.constant 0 : i32
    %c0_i32_1 = arith.constant 0 : i32
    return %c0_i32, %c0_i32_0 : i32, i32
  }
  func.func @transform_3(%arg0: i32) -> (i32, i32) {
    %c0_i32 = arith.constant 0 : i32
    %c0_i32_0 = arith.constant 0 : i32
    %c0_i32_1 = arith.constant 0 : i32
    return %c0_i32, %c0_i32_0 : i32, i32
  }
  func.func @transform_4(%arg0: i32) -> (i32, i32) {
    %c0_i32 = arith.constant 0 : i32
    %c0_i32_0 = arith.constant 0 : i32
    %c0_i32_1 = arith.constant 0 : i32
    return %c0_i32, %c0_i32_0 : i32, i32
  }
  func.func @transform_5(%arg0: i32) -> (i32, i32) {
    %c0_i32 = arith.constant 0 : i32
    %c0_i32_0 = arith.constant 0 : i32
    %c0_i32_1 = arith.constant 0 : i32
    return %c0_i32, %c0_i32_0 : i32, i32
  }
  func.func @transform_6(%arg0: i32) -> (i32, i32) {
    %c0_i32 = arith.constant 0 : i32
    %c0_i32_0 = arith.constant 0 : i32
    %c0_i32_1 = arith.constant 0 : i32
    return %c0_i32, %c0_i32_0 : i32, i32
  }
  func.func @transform_7(%arg0: i32) -> (i32, i32) {
    %c0_i32 = arith.constant 0 : i32
    %c0_i32_0 = arith.constant 0 : i32
    return %arg0, %c0_i32 : i32, i32
  }
}

</mosaic_0001>

<llo_original>
// kernel: tpu_custom_call.1
$region0: #{tpu_custom_call.1}
  #allocation0 [shape = 'u32[]', space=smem, size = 0x4, offset = 0x4, fixed_abs, tag = 'smem constant byte address 0x4 - core index']
  #allocation1 [shape = 'u32[144,128]{1,0:T(1,128)}', space=vmem, size = 0x12000, scoped, tag = 'internal scratch']
  %s0 = inlined_call_operand.vmem [shape: bf16[32,21], index: 0, kind: input, shape index: {}]
  %s1 = inlined_call_operand.vmem [shape: bf16[21,128], index: 1, kind: input, shape index: {}]
  %s2 = inlined_call_operand.vmem [shape: f32[1,128], index: 2, kind: input, shape index: {}]
  %s3 = inlined_call_operand.vmem [shape: bf16[128,64], index: 3, kind: input, shape index: {}]
  %s4 = inlined_call_operand.vmem [shape: f32[1,64], index: 4, kind: input, shape index: {}]
  %s5 = inlined_call_operand.vmem [shape: bf16[64,8], index: 5, kind: input, shape index: {}]
  %s6 = inlined_call_operand.vmem [shape: f32[1,8], index: 6, kind: input, shape index: {}]
  %s7 = inlined_call_operand.vmem [shape: f32[32,8], index: 7, kind: output, shape index: {}]
  %s8 = sld [smem:[#allocation0]]
  $region61: #{tpu_custom_call.1} parent=0
    _
  %s10 = ssub.s32 1, %s8
  %s11 = scalar_select 0, %s10, %s8
  loop: start=0, step=1, limit=4
  $region2: #{tpu_custom_call.1} parent=0 // loop_pre_header
    _
  $region3: #{tpu_custom_call.1} parent=0 // loop_header
    %s13 = sphi 0, %s17
    %p14 = scmp.ge.s32.totalorder %s13, 4
    %s23 = sphi 0, %s25
    %s26 = sphi 0, %s23
    %s27 = sphi 0, %s26
    %s43 = sphi 0, %s27
    %s47 = sphi 0, %s47
    %s49 = sphi 0, %s47
    %s50 = sphi 0, %s49
    %s64 = sphi 0, %s50
    %s68 = sphi 0, %s68
    %s70 = sphi 0, %s68
    %s71 = sphi 0, %s70
    %s85 = sphi 0, %s71
    %s89 = sphi 0, %s89
    %s91 = sphi 0, %s89
    %s92 = sphi 0, %s91
    %s106 = sphi 0, %s92
    %s110 = sphi 0, %s110
    %s112 = sphi 0, %s110
    %s113 = sphi 0, %s112
    %s127 = sphi 0, %s113
    %s131 = sphi 0, %s131
    %s133 = sphi 0, %s131
    %s134 = sphi 0, %s133
    %s148 = sphi 0, %s134
    %s152 = sphi 0, %s152
    %s154 = sphi 0, %s152
    %s155 = sphi 0, %s154
    %s169 = sphi 0, %s155
    %s175 = sphi 0, %s177
    %s178 = sphi 0, %s175
    %s179 = sphi 0, %s178
    %s195 = sphi 0, %s179
  $region4: #{tpu_custom_call.1} parent=0 // loop_header_branch
    %16 = sbr.rel (%p14) target = $region8
  $region5: #{tpu_custom_call.1} parent=0 // loop_body
    %s18 = ssub.s32 %s13, 1
    %s19 = ssub.s32 %s13, 2
    %s20 = sadd.s32 %s13, 1
    %s21 = ssub.s32 %s13, %s20
    %p22 = scmp.eq.s32.totalorder %s21, 0
    %s24 = sadd.s32 %s23, 1
    %s25 = scalar_select %p22, %s23, %s24
    %p28 = pneg %p22
    %p29 = scmp.eq.s32.totalorder %s13, 1
    %p30 = por %p28, %p29
    %p31 = scmp.ne.s32.totalorder %s23, %s26
    %p32 = scmp.eq.s32.totalorder %s13, 0
    %p33 = por %p31, %p32
    %p34 = scmp.ne.s32.totalorder %s23, %s26
    %p35 = scmp.eq.s32.totalorder %s18, 1
    %p36 = por %p34, %p35
    %p37 = scmp.ne.s32.totalorder %s26, %s27
    %p38 = scmp.eq.s32.totalorder %s18, 0
    %p39 = por %p37, %p38
    %p40 = scmp.ne.s32.totalorder %s26, %s27
    %p41 = scmp.eq.s32.totalorder %s19, 1
    %p42 = por %p40, %p41
    %p44 = scmp.ne.s32.totalorder %s27, %s43
    %p45 = scmp.eq.s32.totalorder %s19, 0
    %p46 = por %p44, %p45
    %s48 = sadd.s32 %s47, 1
    %p51 = scmp.eq.s32.totalorder %s13, 1
    %p52 = scmp.ne.s32.totalorder %s47, %s49
    %p53 = scmp.eq.s32.totalorder %s13, 0
    %p54 = por %p52, %p53
    %p55 = scmp.ne.s32.totalorder %s47, %s49
    %p56 = scmp.eq.s32.totalorder %s18, 1
    %p57 = por %p55, %p56
    %p58 = scmp.ne.s32.totalorder %s49, %s50
    %p59 = scmp.eq.s32.totalorder %s18, 0
    %p60 = por %p58, %p59
    %p61 = scmp.ne.s32.totalorder %s49, %s50
    %p62 = scmp.eq.s32.totalorder %s19, 1
    %p63 = por %p61, %p62
    %p65 = scmp.ne.s32.totalorder %s50, %s64
    %p66 = scmp.eq.s32.totalorder %s19, 0
    %p67 = por %p65, %p66
    %s69 = sadd.s32 %s68, 1
    %p72 = scmp.eq.s32.totalorder %s13, 1
    %p73 = scmp.ne.s32.totalorder %s68, %s70
    %p74 = scmp.eq.s32.totalorder %s13, 0
    %p75 = por %p73, %p74
    %p76 = scmp.ne.s32.totalorder %s68, %s70
    %p77 = scmp.eq.s32.totalorder %s18, 1
    %p78 = por %p76, %p77
    %p79 = scmp.ne.s32.totalorder %s70, %s71
    %p80 = scmp.eq.s32.totalorder %s18, 0
    %p81 = por %p79, %p80
    %p82 = scmp.ne.s32.totalorder %s70, %s71
    %p83 = scmp.eq.s32.totalorder %s19, 1
    %p84 = por %p82, %p83
    %p86 = scmp.ne.s32.totalorder %s71, %s85
    %p87 = scmp.eq.s32.totalorder %s19, 0
    %p88 = por %p86, %p87
    %s90 = sadd.s32 %s89, 1
    %p93 = scmp.eq.s32.totalorder %s13, 1
    %p94 = scmp.ne.s32.totalorder %s89, %s91
    %p95 = scmp.eq.s32.totalorder %s13, 0
    %p96 = por %p94, %p95
    %p97 = scmp.ne.s32.totalorder %s89, %s91
    %p98 = scmp.eq.s32.totalorder %s18, 1
    %p99 = por %p97, %p98
    %p100 = scmp.ne.s32.totalorder %s91, %s92
    %p101 = scmp.eq.s32.totalorder %s18, 0
    %p102 = por %p100, %p101
    %p103 = scmp.ne.s32.totalorder %s91, %s92
    %p104 = scmp.eq.s32.totalorder %s19, 1
    %p105 = por %p103, %p104
    %p107 = scmp.ne.s32.totalorder %s92, %s106
    %p108 = scmp.eq.s32.totalorder %s19, 0
    %p109 = por %p107, %p108
    %s111 = sadd.s32 %s110, 1
    %p114 = scmp.eq.s32.totalorder %s13, 1
    %p115 = scmp.ne.s32.totalorder %s110, %s112
    %p116 = scmp.eq.s32.totalorder %s13, 0
    %p117 = por %p115, %p116
    %p118 = scmp.ne.s32.totalorder %s110, %s112
    %p119 = scmp.eq.s32.totalorder %s18, 1
    %p120 = por %p118, %p119
    %p121 = scmp.ne.s32.totalorder %s112, %s113
    %p122 = scmp.eq.s32.totalorder %s18, 0
    %p123 = por %p121, %p122
    %p124 = scmp.ne.s32.totalorder %s112, %s113
    %p125 = scmp.eq.s32.totalorder %s19, 1
    %p126 = por %p124, %p125
    %p128 = scmp.ne.s32.totalorder %s113, %s127
    %p129 = scmp.eq.s32.totalorder %s19, 0
    %p130 = por %p128, %p129
    %s132 = sadd.s32 %s131, 1
    %p135 = scmp.eq.s32.totalorder %s13, 1
    %p136 = scmp.ne.s32.totalorder %s131, %s133
    %p137 = scmp.eq.s32.totalorder %s13, 0
    %p138 = por %p136, %p137
    %p139 = scmp.ne.s32.totalorder %s131, %s133
    %p140 = scmp.eq.s32.totalorder %s18, 1
    %p141 = por %p139, %p140
    %p142 = scmp.ne.s32.totalorder %s133, %s134
    %p143 = scmp.eq.s32.totalorder %s18, 0
    %p144 = por %p142, %p143
    %p145 = scmp.ne.s32.totalorder %s133, %s134
    %p146 = scmp.eq.s32.totalorder %s19, 1
    %p147 = por %p145, %p146
    %p149 = scmp.ne.s32.totalorder %s134, %s148
    %p150 = scmp.eq.s32.totalorder %s19, 0
    %p151 = por %p149, %p150
    %s153 = sadd.s32 %s152, 1
    %p156 = scmp.eq.s32.totalorder %s13, 1
    %p157 = scmp.ne.s32.totalorder %s152, %s154
    %p158 = scmp.eq.s32.totalorder %s13, 0
    %p159 = por %p157, %p158
    %p160 = scmp.ne.s32.totalorder %s152, %s154
    %p161 = scmp.eq.s32.totalorder %s18, 1
    %p162 = por %p160, %p161
    %p163 = scmp.ne.s32.totalorder %s154, %s155
    %p164 = scmp.eq.s32.totalorder %s18, 0
    %p165 = por %p163, %p164
    %p166 = scmp.ne.s32.totalorder %s154, %s155
    %p167 = scmp.eq.s32.totalorder %s19, 1
    %p168 = por %p166, %p167
    %p170 = scmp.ne.s32.totalorder %s155, %s169
    %p171 = scmp.eq.s32.totalorder %s19, 0
    %p172 = por %p170, %p171
    %s173 = ssub.s32 %s13, %s20
    %p174 = scmp.eq.s32.totalorder %s173, 0
    %s176 = sadd.s32 %s175, 1
    %s177 = scalar_select %p174, %s175, %s176
    %p180 = pneg %p174
    %p181 = scmp.eq.s32.totalorder %s13, 1
    %p182 = por %p180, %p181
    %p183 = scmp.ne.s32.totalorder %s175, %s178
    %p184 = scmp.eq.s32.totalorder %s13, 0
    %p185 = por %p183, %p184
    %p186 = scmp.ne.s32.totalorder %s175, %s178
    %p187 = scmp.eq.s32.totalorder %s18, 1
    %p188 = por %p186, %p187
    %p189 = scmp.ne.s32.totalorder %s178, %s179
    %p190 = scmp.eq.s32.totalorder %s18, 0
    %p191 = por %p189, %p190
    %p192 = scmp.ne.s32.totalorder %s178, %s179
    %p193 = scmp.eq.s32.totalorder %s19, 1
    %p194 = por %p192, %p193
    %p196 = scmp.ne.s32.totalorder %s179, %s195
    %p197 = scmp.eq.s32.totalorder %s19, 0
    %p198 = por %p196, %p197
    %p199 = scmp.le.s32.totalorder 1, %s13
    %p200 = scmp.lt.s32.totalorder %s13, 3
    %p201 = pnand %p199, %p200
    %p202 = pneg %p201
    // Predicated region
    $region9: #{tpu_custom_call.1} parent=5 // pred_check
      _
    $region10: #{tpu_custom_call.1} parent=5 // pred_check_branch
      %204 = sbr.rel (%p201) target = $region12
    $region11: #{tpu_custom_call.1} parent=5 // pred_region
      %s205 = ssub.s32 %s13, 1
      // Predicated region
      $region13: #{tpu_custom_call.1} parent=11 // pred_check
        %p206 = pneg %p60
      $region14: #{tpu_custom_call.1} parent=11 // pred_check_branch
        %208 = sbr.rel (%p206) target = $region16
      $region15: #{tpu_custom_call.1} parent=11 // pred_region
        _
      $region16: #{tpu_custom_call.1} parent=11 // pred_fallthru
        _
      // Predicated region
      $region17: #{tpu_custom_call.1} parent=11 // pred_check
        %p209 = pneg %p81
      $region18: #{tpu_custom_call.1} parent=11 // pred_check_branch
        %211 = sbr.rel (%p209) target = $region20
      $region19: #{tpu_custom_call.1} parent=11 // pred_region
        _
      $region20: #{tpu_custom_call.1} parent=11 // pred_fallthru
        _
      // Predicated region
      $region21: #{tpu_custom_call.1} parent=11 // pred_check
        %p212 = pneg %p102
      $region22: #{tpu_custom_call.1} parent=11 // pred_check_branch
        %214 = sbr.rel (%p212) target = $region24
      $region23: #{tpu_custom_call.1} parent=11 // pred_region
        _
      $region24: #{tpu_custom_call.1} parent=11 // pred_fallthru
        _
      // Predicated region
      $region25: #{tpu_custom_call.1} parent=11 // pred_check
        %p215 = pneg %p123
      $region26: #{tpu_custom_call.1} parent=11 // pred_check_branch
        %217 = sbr.rel (%p215) target = $region28
      $region27: #{tpu_custom_call.1} parent=11 // pred_region
        _
      $region28: #{tpu_custom_call.1} parent=11 // pred_fallthru
        _
      // Predicated region
      $region29: #{tpu_custom_call.1} parent=11 // pred_check
        %p218 = pneg %p144
      $region30: #{tpu_custom_call.1} parent=11 // pred_check_branch
        %220 = sbr.rel (%p218) target = $region32
      $region31: #{tpu_custom_call.1} parent=11 // pred_region
        _
      $region32: #{tpu_custom_call.1} parent=11 // pred_fallthru
        _
      // Predicated region
      $region33: #{tpu_custom_call.1} parent=11 // pred_check
        %p221 = pneg %p165
      $region34: #{tpu_custom_call.1} parent=11 // pred_check_branch
        %223 = sbr.rel (%p221) target = $region36
      $region35: #{tpu_custom_call.1} parent=11 // pred_region
        _
      $region36: #{tpu_custom_call.1} parent=11 // pred_fallthru
        _
    $region12: #{tpu_custom_call.1} parent=5 // pred_fallthru
      _
    %p224 = scmp.lt.s32.totalorder %s13, 2
    // Predicated region
    $region37: #{tpu_custom_call.1} parent=5 // pred_check
      %p225 = pneg %p224
    $region38: #{tpu_custom_call.1} parent=5 // pred_check_branch
      %227 = sbr.rel (%p225) target = $region40
    $region39: #{tpu_custom_call.1} parent=5 // pred_region
      // Predicated region
      $region41: #{tpu_custom_call.1} parent=39 // pred_check
        %p228 = pneg %p33
      $region42: #{tpu_custom_call.1} parent=39 // pred_check_branch
        %230 = sbr.rel (%p228) target = $region44
      $region43: #{tpu_custom_call.1} parent=39 // pred_region
        %s231 = smul.u32 2, %s13
        %p232 = scmp.lt.s32.totalorder %s231, 3
        %s233 = scalar_select %p232, %s231, 3
        %s234 = smul.addr %s233, 4
        %s235 = scalar_lea.vmem %s0, %s234
        %s236 = smul.u32 2, %s13
      $region44: #{tpu_custom_call.1} parent=39 // pred_fallthru
        _
    $region40: #{tpu_custom_call.1} parent=5 // pred_fallthru
      _
    %p237 = scmp.le.s32.totalorder 1, %s13
    %p238 = scmp.lt.s32.totalorder %s13, 3
    %p239 = pnand %p237, %p238
    %p240 = pneg %p239
    // Predicated region
    $region45: #{tpu_custom_call.1} parent=5 // pred_check
      _
    $region46: #{tpu_custom_call.1} parent=5 // pred_check_branch
      %242 = sbr.rel (%p239) target = $region48
    $region47: #{tpu_custom_call.1} parent=5 // pred_region
      %s243 = ssub.s32 %s13, 1
      %s244 = smul.u32 2, %s18
      %p245 = scmp.lt.s32.totalorder %s244, 3
      %s246 = scalar_select %p245, %s244, 3
      %s247 = smul.addr %s246, 4
      %s248 = scalar_lea.vmem %s0, %s247
      %p249 = pneg %p39
      %p250 = pneg %p36
      %p251 = pneg %p60
      %p252 = pneg %p57
      %p253 = pneg %p81
      %p254 = pneg %p78
      %p255 = pneg %p102
      %p256 = pneg %p99
      %p257 = pneg %p123
      %p258 = pneg %p120
      %p259 = pneg %p144
      %p260 = pneg %p141
      %p261 = pneg %p165
      %p262 = pneg %p162
      %p263 = pneg %p191
      %p264 = pneg %p188
      %s265 = smul.u32 2, %s18
      %p266 = scmp.lt.s32.totalorder %s265, 3
      %s267 = scalar_select %p266, %s265, 3
      %s268 = smul.addr %s267, 8
      %s269 = scalar_lea.vmem %s7, %s268
      %s270 = smul.u32 2, %s18
      %p271 = scmp.lt.s32.totalorder %s270, 3
      %s272 = scalar_select %p271, %s270, 3
      %s273 = smul.addr %s272, 4
      %s274 = scalar_lea.vmem %s0, %s273
      %s275 = smul.u32 2, %s18
      %s276 = smul.u32 2, %s18
      %p277 = scmp.lt.s32.totalorder %s276, 3
      %s278 = scalar_select %p277, %s276, 3
      %s279 = smul.addr %s278, 8
      %s280 = scalar_lea.vmem %s7, %s279
      %s281 = smul.u32 2, %s18
      %v283 = vld [vmem:[%s274] sm:$0xf]
      %v284 = vld [vmem:[%s274 + $0x4] sm:$0xf]
      %v285 = vld [vmem:[%s1] sm:$0xf]
      %v286 = vld [vmem:[%s1 + $0x4] sm:$0xf]
      %v287 = vld [vmem:[%s1 + $0x8] sm:$0x7]
      %v288 = vld [vmem:[%s2] sm:$0x1]
      %v290 = vlaneseq
      %v291 = vshrl.u32 %v290, 7
      %v292 = vsub.s32 0, %v291
      %v293 = vrot.slane %v288, %v292
      %v297 = vunpack.c.l.b16 %v283
      %v298 = vunpack.c.l.b16 %v284
      %v299 = vpack.c.b16 %v298, %v297
      %v303 = vunpack.c.l.b16 %v285
      %v304 = vunpack.c.l.b16 %v286
      %v305 = vunpack.c.l.b16 %v287
      %v306 = vpack.c.b16 %v304, %v303
      %v307 = vpack.c.b16 %v305, %v305
      %vm309 = vcmask 171008
      %v311 = vsel %vm309, %v299, 0
      %vm313 = vcmask 1041408
      %vm314 = vcmask 1042432
      %v315 = vsel %vm313, 4294967295, 65535
      %v316 = vsel %vm314, %v315, 0
      %v318 = vand.u32 %v307, %v316
      %320 = vmatprep.subr.bf16.mxu0 0
      %321 = vmatpush1.bf16.msra.mxu0 %v306
      %322 = vmatprep.subr.bf16.mxu0 0
      %323 = vmatpush1.bf16.msra.mxu0 %v318
      %324 = vmatprep.subr.bf16.mxu0 0
      %325 = vmatpush1.bf16.msra.mxu0 0
      %326 = vmatprep.subr.bf16.mxu0 0
      %327 = vmatpush1.bf16.msra.mxu0 0
      %328 = vmatprep.subr.bf16.mxu0 0
      %329 = vmatpush1.bf16.msra.mxu0 0
      %330 = vmatprep.subr.bf16.mxu0 0
      %331 = vmatpush1.bf16.msra.mxu0 0
      %332 = vmatprep.subr.bf16.mxu0 0
      %333 = vmatpush1.bf16.msra.mxu0 0
      %334 = vmatprep.subr.bf16.mxu0 0
      %335 = vmatpush1.bf16.msra.mxu0 0
      %336 = vmatprep.subr.bf16.mxu0 0
      %337 = vmatpush1.bf16.msra.mxu0 0
      %338 = vmatprep.subr.bf16.mxu0 0
      %339 = vmatpush1.bf16.msra.mxu0 0
      %340 = vmatprep.subr.bf16.mxu0 0
      %341 = vmatpush1.bf16.msra.mxu0 0
      %342 = vmatprep.subr.bf16.mxu0 0
      %343 = vmatpush1.bf16.msra.mxu0 0
      %344 = vmatprep.subr.bf16.mxu0 0
      %345 = vmatpush1.bf16.msra.mxu0 0
      %346 = vmatprep.subr.bf16.mxu0 0
      %347 = vmatpush1.bf16.msra.mxu0 0
      %348 = vmatprep.subr.bf16.mxu0 0
      %349 = vmatpush1.bf16.msra.mxu0 0
      %350 = vmatprep.subr.bf16.mxu0 0
      %351 = vmatpush1.bf16.msra.mxu0 0
      %352 = vmatprep.mubr.bf16.mxu0 0
      %353 = vmatmul.mubr.bf16.gmra.mrb[0].mxu0 %v311
      %v354 = vpop.f32.mrb[0].mxu0
      %v355 = vadd.f32 %v293, %v354
      %v356 = vpop.f32.mrb[0].mxu0
      %v357 = vpop.f32.mrb[0].mxu0
      %v358 = vadd.f32 %v293, %v357
      %v359 = vpop.f32.mrb[0].mxu0
      %360 = vdwg.mxu0
      %v361 = vmax.f32 %v355, 0.0
      %v362 = vmax.f32 %v358, 0.0
      %v363 = vpack.c.bf16 %v362, %v361
      %v364 = vld [vmem:[%s3] sm:$0xf]
      %v365 = vld [vmem:[%s3 + $0x4] sm:$0xf]
      %v366 = vld [vmem:[%s3 + $0x8] sm:$0xf]
      %v367 = vld [vmem:[%s3 + $0xc] sm:$0xf]
      %v368 = vld [vmem:[%s3 + $0x10] sm:$0xf]
      %v369 = vld [vmem:[%s3 + $0x14] sm:$0xf]
      %v370 = vld [vmem:[%s3 + $0x18] sm:$0xf]
      %v371 = vld [vmem:[%s3 + $0x1c] sm:$0xf]
      %v372 = vld [vmem:[%s3 + $0x20] sm:$0xf]
      %v373 = vld [vmem:[%s3 + $0x24] sm:$0xf]
      %v374 = vld [vmem:[%s3 + $0x28] sm:$0xf]
      %v375 = vld [vmem:[%s3 + $0x2c] sm:$0xf]
      %v376 = vld [vmem:[%s3 + $0x30] sm:$0xf]
      %v377 = vld [vmem:[%s3 + $0x34] sm:$0xf]
      %v378 = vld [vmem:[%s3 + $0x38] sm:$0xf]
      %v379 = vld [vmem:[%s3 + $0x3c] sm:$0xf]
      %v380 = vld [vmem:[%s4] sm:$0x1]
      %v382 = vlaneseq
      %v383 = vshrl.u32 %v382, 7
      %v384 = vsub.s32 0, %v383
      %v385 = vrot.slane %v380, %v384
      %v403 = vunpack.c.l.b16 %v364
      %v404 = vunpack.c.l.b16 %v365
      %v405 = vunpack.c.l.b16 %v366
      %v406 = vunpack.c.l.b16 %v367
      %v407 = vunpack.c.l.b16 %v368
      %v408 = vunpack.c.l.b16 %v369
      %v409 = vunpack.c.l.b16 %v370
      %v410 = vunpack.c.l.b16 %v371
      %v411 = vunpack.c.l.b16 %v372
      %v412 = vunpack.c.l.b16 %v373
      %v413 = vunpack.c.l.b16 %v374
      %v414 = vunpack.c.l.b16 %v375
      %v415 = vunpack.c.l.b16 %v376
      %v416 = vunpack.c.l.b16 %v377
      %v417 = vunpack.c.l.b16 %v378
      %v418 = vunpack.c.l.b16 %v379
      %v419 = vpack.c.b16 %v404, %v403
      %v420 = vpack.c.b16 %v406, %v405
      %v421 = vpack.c.b16 %v408, %v407
      %v422 = vpack.c.b16 %v410, %v409
      %v423 = vpack.c.b16 %v412, %v411
      %v424 = vpack.c.b16 %v414, %v413
      %v425 = vpack.c.b16 %v416, %v415
      %v426 = vpack.c.b16 %v418, %v417
      %435 = vmatprep.subr.bf16.mxu0 0
      %436 = vmatpush1.bf16.msra.mxu0 %v419
      %437 = vmatprep.subr.bf16.mxu0 0
      %438 = vmatpush1.bf16.msra.mxu0 %v420
      %439 = vmatprep.subr.bf16.mxu0 0
      %440 = vmatpush1.bf16.msra.mxu0 %v421
      %441 = vmatprep.subr.bf16.mxu0 0
      %442 = vmatpush1.bf16.msra.mxu0 %v422
      %443 = vmatprep.subr.bf16.mxu0 0
      %444 = vmatpush1.bf16.msra.mxu0 %v423
      %445 = vmatprep.subr.bf16.mxu0 0
      %446 = vmatpush1.bf16.msra.mxu0 %v424
      %447 = vmatprep.subr.bf16.mxu0 0
      %448 = vmatpush1.bf16.msra.mxu0 %v425
      %449 = vmatprep.subr.bf16.mxu0 0
      %450 = vmatpush1.bf16.msra.mxu0 %v426
      %451 = vmatprep.subr.bf16.mxu0 0
      %452 = vmatpush1.bf16.msra.mxu0 0
      %453 = vmatprep.subr.bf16.mxu0 0
      %454 = vmatpush1.bf16.msra.mxu0 0
      %455 = vmatprep.subr.bf16.mxu0 0
      %456 = vmatpush1.bf16.msra.mxu0 0
      %457 = vmatprep.subr.bf16.mxu0 0
      %458 = vmatpush1.bf16.msra.mxu0 0
      %459 = vmatprep.subr.bf16.mxu0 0
      %460 = vmatpush1.bf16.msra.mxu0 0
      %461 = vmatprep.subr.bf16.mxu0 0
      %462 = vmatpush1.bf16.msra.mxu0 0
      %463 = vmatprep.subr.bf16.mxu0 0
      %464 = vmatpush1.bf16.msra.mxu0 0
      %465 = vmatprep.subr.bf16.mxu0 0
      %466 = vmatpush1.bf16.msra.mxu0 0
      %467 = vmatprep.mubr.bf16.mxu0 0
      %468 = vmatmul.mubr.bf16.gmra.mrb[0].mxu0 %v363
      %v469 = vpop.f32.mrb[0].mxu0
      %v470 = vadd.f32 %v385, %v469
      %v471 = vpop.f32.mrb[0].mxu0
      %v472 = vpop.f32.mrb[0].mxu0
      %v473 = vadd.f32 %v385, %v472
      %v474 = vpop.f32.mrb[0].mxu0
      %475 = vdwg.mxu0
      %v476 = vmax.f32 %v470, 0.0
      %v477 = vmax.f32 %v473, 0.0
      %v478 = vpack.c.bf16 %v477, %v476
      %v479 = vld [vmem:[%s5] sm:$0xf]
      %v480 = vld [vmem:[%s5 + $0x4] sm:$0xf]
      %v481 = vld [vmem:[%s5 + $0x8] sm:$0xf]
      %v482 = vld [vmem:[%s5 + $0xc] sm:$0xf]
      %v483 = vld [vmem:[%s5 + $0x10] sm:$0xf]
      %v484 = vld [vmem:[%s5 + $0x14] sm:$0xf]
      %v485 = vld [vmem:[%s5 + $0x18] sm:$0xf]
      %v486 = vld [vmem:[%s5 + $0x1c] sm:$0xf]
      %v487 = vld [vmem:[%s6] sm:$0x1]
      %v489 = vlaneseq
      %v490 = vshrl.u32 %v489, 7
      %v491 = vsub.s32 0, %v490
      %v492 = vrot.slane %v487, %v491
      %v502 = vunpack.c.l.b16 %v479
      %v503 = vunpack.c.l.b16 %v480
      %v504 = vunpack.c.l.b16 %v481
      %v505 = vunpack.c.l.b16 %v482
      %v506 = vunpack.c.l.b16 %v483
      %v507 = vunpack.c.l.b16 %v484
      %v508 = vunpack.c.l.b16 %v485
      %v509 = vunpack.c.l.b16 %v486
      %v510 = vpack.c.b16 %v503, %v502
      %v511 = vpack.c.b16 %v505, %v504
      %v512 = vpack.c.b16 %v507, %v506
      %v513 = vpack.c.b16 %v509, %v508
      %vm518 = vcmask 523264
      %v520 = vsel %vm518, %v478, 0
      %522 = vmatprep.subr.bf16.mxu0 0
      %523 = vmatpush1.bf16.msra.mxu0 %v510
      %524 = vmatprep.subr.bf16.mxu0 0
      %525 = vmatpush1.bf16.msra.mxu0 %v511
      %526 = vmatprep.subr.bf16.mxu0 0
      %527 = vmatpush1.bf16.msra.mxu0 %v512
      %528 = vmatprep.subr.bf16.mxu0 0
      %529 = vmatpush1.bf16.msra.mxu0 %v513
      %530 = vmatprep.subr.bf16.mxu0 0
      %531 = vmatpush1.bf16.msra.mxu0 0
      %532 = vmatprep.subr.bf16.mxu0 0
      %533 = vmatpush1.bf16.msra.mxu0 0
      %534 = vmatprep.subr.bf16.mxu0 0
      %535 = vmatpush1.bf16.msra.mxu0 0
      %536 = vmatprep.subr.bf16.mxu0 0
      %537 = vmatpush1.bf16.msra.mxu0 0
      %538 = vmatprep.subr.bf16.mxu0 0
      %539 = vmatpush1.bf16.msra.mxu0 0
      %540 = vmatprep.subr.bf16.mxu0 0
      %541 = vmatpush1.bf16.msra.mxu0 0
      %542 = vmatprep.subr.bf16.mxu0 0
      %543 = vmatpush1.bf16.msra.mxu0 0
      %544 = vmatprep.subr.bf16.mxu0 0
      %545 = vmatpush1.bf16.msra.mxu0 0
      %546 = vmatprep.subr.bf16.mxu0 0
      %547 = vmatpush1.bf16.msra.mxu0 0
      %548 = vmatprep.subr.bf16.mxu0 0
      %549 = vmatpush1.bf16.msra.mxu0 0
      %550 = vmatprep.subr.bf16.mxu0 0
      %551 = vmatpush1.bf16.msra.mxu0 0
      %552 = vmatprep.subr.bf16.mxu0 0
      %553 = vmatpush1.bf16.msra.mxu0 0
      %554 = vmatprep.mubr.bf16.mxu0 0
      %555 = vmatmul.mubr.bf16.gmra.mrb[0].mxu0 %v520
      %v556 = vpop.f32.mrb[0].mxu0
      %v557 = vadd.f32 %v492, %v556
      %v558 = vpop.f32.mrb[0].mxu0
      %v559 = vpop.f32.mrb[0].mxu0
      %v560 = vadd.f32 %v492, %v559
      %v561 = vpop.f32.mrb[0].mxu0
      %562 = vdwg.mxu0
      %vm563 = vcmask 64512
      %564 = vst.msk [vmem:[%s280] sm:$0xff] %vm563, %v557
      %565 = vst.msk [vmem:[%s280 + $0x8] sm:$0xff] %vm563, %v560
      %s566 = smul.u32 2, %s18
      %p567 = scmp.lt.s32.totalorder %s566, 3
      %s568 = scalar_select %p567, %s566, 3
      %s569 = smul.addr %s568, 8
      %s570 = scalar_lea.vmem %s7, %s569
      // Predicated region
      $region49: #{tpu_custom_call.1} parent=47 // pred_check
        %p571 = pneg %p188
      $region50: #{tpu_custom_call.1} parent=47 // pred_check_branch
        %573 = sbr.rel (%p571) target = $region52
      $region51: #{tpu_custom_call.1} parent=47 // pred_region
        %s574 = smul.u32 2, %s18
      $region52: #{tpu_custom_call.1} parent=47 // pred_fallthru
        _
    $region48: #{tpu_custom_call.1} parent=5 // pred_fallthru
      _
    %p575 = scmp.le.s32.totalorder 2, %s13
    // Predicated region
    $region53: #{tpu_custom_call.1} parent=5 // pred_check
      %p576 = pneg %p575
    $region54: #{tpu_custom_call.1} parent=5 // pred_check_branch
      %578 = sbr.rel (%p576) target = $region56
    $region55: #{tpu_custom_call.1} parent=5 // pred_region
      %s579 = ssub.s32 %s13, 2
      // Predicated region
      $region57: #{tpu_custom_call.1} parent=55 // pred_check
        %p580 = pneg %p194
      $region58: #{tpu_custom_call.1} parent=55 // pred_check_branch
        %582 = sbr.rel (%p580) target = $region60
      $region59: #{tpu_custom_call.1} parent=55 // pred_region
        %s583 = smul.u32 2, %s19
        %p584 = scmp.lt.s32.totalorder %s583, 3
        %s585 = scalar_select %p584, %s583, 3
        %s586 = smul.addr %s585, 8
        %s587 = scalar_lea.vmem %s7, %s586
      $region60: #{tpu_custom_call.1} parent=55 // pred_fallthru
        _
    $region56: #{tpu_custom_call.1} parent=5 // pred_fallthru
      _
  $region6: #{tpu_custom_call.1} parent=0 // loop_footer
    %s17 = sadd.s32 1, %s13
  $region7: #{tpu_custom_call.1} parent=0 // loop_footer_branch
    %12 = sbr.rel target = $region3
  $region8: #{tpu_custom_call.1} parent=0 // loop_exit
    _

</llo_original>
